<compile_context>
chip_gen: v5e
topology: v5e:2x2
jax: 0.10.0
libtpu: 0.0.40
codegen_flags: <defaults>
</compile_context>

<pallas_src>
import functools

import jax
import jax.numpy as jnp
from jax.experimental import pallas as pl
from jax.experimental.pallas import tpu as pltpu

_SUBLANE = 8
_LANE = 128
_TARGET_STEP_BYTES = 4 * 1024 * 1024   # input bytes (all 3 streams) per grid step
_MAX_BLK_ROWS = 8192                   # cap rows/block (keeps index math small)
_NUM_SPLITS = 2                        # leading "parallel" grid axis (2 TCs on v7x)


def _masked_mse_kernel(p_ref, t_ref, m_ref, num_ref, den_ref, *,
                       rows, blk_rows, steps, need_mask):
    i = pl.program_id(0)      # split index ("parallel" -> per-core on v7x)
    j = pl.program_id(1)      # reduction step within the split ("arbitrary")

    # Output blocks are resident across the reduction axis: init them once.
    @pl.when(j == 0)
    def _():
        num_ref[...] = jnp.zeros_like(num_ref)
        den_ref[...] = jnp.zeros_like(den_ref)

    # In-register cast; HBM traffic stays at the inputs' native width.
    p = p_ref[...].astype(jnp.float32)
    t = t_ref[...].astype(jnp.float32)
    m = m_ref[...].astype(jnp.float32)

    if need_mask:
        # The last block of a split (and fully clamped blocks) may extend
        # past `rows`; zero BOTH the numerator and the denominator there so
        # out-of-bounds garbage (possibly NaN/Inf) never contributes.
        base_row = (i * steps + j) * blk_rows
        row_ids = base_row + jax.lax.broadcasted_iota(
            jnp.int32, (blk_rows, _LANE), 0)
        valid = row_ids < rows
        m = jnp.where(valid, m, 0.0)
        d = jnp.where(valid, (p - t) * (p - t) * m, 0.0)
    else:
        d = (p - t) * (p - t) * m

    # Pure-VPU accumulation: elementwise adds of (8,128) vreg slabs into the
    # resident lane-dense output block.  No per-step cross-lane reduce.
    num_ref[...] += jnp.sum(d.reshape(-1, _SUBLANE, _LANE), axis=0)[None]
    den_ref[...] += jnp.sum(m.reshape(-1, _SUBLANE, _LANE), axis=0)[None]


def masked_mse_loss(prediction, target, mask):
    """Pallas TPU implementation of MaskedMSELoss.forward."""
    if prediction.shape != target.shape or prediction.shape != mask.shape:
        raise ValueError("prediction, target and mask must share a shape")

    p = jnp.ravel(prediction)
    t = jnp.ravel(target)
    m = jnp.ravel(mask)
    if m.dtype == jnp.bool_:
        m = m.astype(jnp.int8)   # keep the mask stream at 1 byte/element

    n = p.shape[0]
    tile = _SUBLANE * _LANE
    n_pad = pl.cdiv(n, tile) * tile
    if n_pad != n:
        # Only ragged sizes pay this copy; padded mask entries are zero so
        # they contribute to neither the numerator nor the denominator.
        pad = (0, n_pad - n)
        p = jnp.pad(p, pad)
        t = jnp.pad(t, pad)
        m = jnp.pad(m, pad)

    rows = n_pad // _LANE                      # multiple of 8
    p2 = p.reshape(rows, _LANE)
    t2 = t.reshape(rows, _LANE)
    m2 = m.reshape(rows, _LANE)

    # Dtype-aware block sizing: ~_TARGET_STEP_BYTES of input per grid step.
    bytes_per_row = _LANE * (p2.dtype.itemsize + t2.dtype.itemsize
                             + m2.dtype.itemsize)
    blk_rows = max(_SUBLANE,
                   (_TARGET_STEP_BYTES // bytes_per_row) // _SUBLANE * _SUBLANE)
    blk_rows = min(blk_rows, _MAX_BLK_ROWS, rows)   # multiples of 8 throughout

    total_blocks = pl.cdiv(rows, blk_rows)
    steps = max(1, pl.cdiv(total_blocks, _NUM_SPLITS))
    need_mask = (_NUM_SPLITS * steps * blk_rows) != rows

    def in_index_map(i, j):
        blk = i * steps + j
        # Clamp fully out-of-range blocks back in range; their contribution
        # is zeroed in-kernel via the row mask.
        return (jnp.minimum(blk, total_blocks - 1), 0)

    tile_spec = pl.BlockSpec((blk_rows, _LANE), in_index_map)
    acc_spec = pl.BlockSpec((1, _SUBLANE, _LANE), lambda i, j: (i, 0, 0))

    kernel = functools.partial(
        _masked_mse_kernel,
        rows=rows, blk_rows=blk_rows, steps=steps, need_mask=need_mask)

    num_parts, den_parts = pl.pallas_call(
        kernel,
        grid_spec=pltpu.PrefetchScalarGridSpec(
            num_scalar_prefetch=0,
            grid=(_NUM_SPLITS, steps),
            in_specs=[tile_spec, tile_spec, tile_spec],
            out_specs=[acc_spec, acc_spec],
        ),
        out_shape=(
            jax.ShapeDtypeStruct((_NUM_SPLITS, _SUBLANE, _LANE), jnp.float32),
            jax.ShapeDtypeStruct((_NUM_SPLITS, _SUBLANE, _LANE), jnp.float32),
        ),
        compiler_params=pltpu.CompilerParams(
            dimension_semantics=("parallel", "arbitrary")),
    )(p2, t2, m2)

    # Tiny epilogue reduce + divide + NaN guard (scalar glue, done in XLA).
    loss = jnp.sum(num_parts) / jnp.sum(den_parts)
    # Matches `if torch.isnan(loss): return torch.tensor(0)` (returned as f32).
    return jnp.where(jnp.isnan(loss), jnp.float32(0.0), loss)


def _reference(prediction, target, mask):
    p = jnp.ravel(prediction).astype(jnp.float32)
    t = jnp.ravel(target).astype(jnp.float32)
    m = jnp.ravel(mask).astype(jnp.float32)
    loss = jnp.sum((p - t) ** 2 * m) / jnp.sum(m)
    return jnp.where(jnp.isnan(loss), jnp.float32(0.0), loss)


if __name__ == "__main__":
    key = jax.random.PRNGKey(0)
    k1, k2, k3 = jax.random.split(key, 3)

    # 1) Small dense-prediction shapes (NCHW-like), all f32.
    shape = (2, 4, 16, 16)
    prediction = jax.random.normal(k1, shape, dtype=jnp.float32)
    target = jax.random.normal(k2, shape, dtype=jnp.float32)
    mask = (jax.random.uniform(k3, shape) > 0.5).astype(jnp.float32)

    loss = masked_mse_loss(prediction, target, mask)
    jax.block_until_ready(loss)
    ref = _reference(prediction, target, mask)
    assert jnp.allclose(loss, ref, rtol=1e-5, atol=1e-6), (loss, ref)

    # 2) Ragged size (numel not a multiple of 1024) + native low-width dtypes.
    k4, k5, k6 = jax.random.split(jax.random.PRNGKey(1), 3)
    shape2 = (3, 5, 7)
    p2 = jax.random.normal(k4, shape2, dtype=jnp.bfloat16)
    t2 = jax.random.normal(k5, shape2, dtype=jnp.bfloat16)
    m2 = (jax.random.uniform(k6, shape2) > 0.3).astype(jnp.int8)
    loss2 = masked_mse_loss(p2, t2, m2)
    jax.block_until_ready(loss2)
    ref2 = _reference(p2, t2, m2)
    assert jnp.allclose(loss2, ref2, rtol=1e-4, atol=1e-6), (loss2, ref2)

    # 3) Multi-block case exercising the 2-way split, block clamp and tail mask.
    k7, k8, k9 = jax.random.split(jax.random.PRNGKey(2), 3)
    shape3 = (5, 4, 128, 210)
    p3 = jax.random.normal(k7, shape3, dtype=jnp.float32)
    t3 = jax.random.normal(k8, shape3, dtype=jnp.float32)
    m3 = (jax.random.uniform(k9, shape3) > 0.5).astype(jnp.float32)
    loss3 = masked_mse_loss(p3, t3, m3)
    jax.block_until_ready(loss3)
    ref3 = _reference(p3, t3, m3)
    assert jnp.allclose(loss3, ref3, rtol=1e-4, atol=1e-6), (loss3, ref3)

    # 4) Boolean mask path (bit-width 1 byte stream) on a ragged shape.
    m3b = (jax.random.uniform(k9, shape3) > 0.5)
    loss3b = masked_mse_loss(p3, t3, m3b)
    jax.block_until_ready(loss3b)
    ref3b = _reference(p3, t3, m3b.astype(jnp.float32))
    assert jnp.allclose(loss3b, ref3b, rtol=1e-4, atol=1e-6), (loss3b, ref3b)

    # 5) All-zero mask -> NaN guard path returns 0 (matches the PyTorch branch).
    zero_loss = masked_mse_loss(prediction, target, jnp.zeros(shape, jnp.float32))
    jax.block_until_ready(zero_loss)
    assert float(zero_loss) == 0.0

    print("KERNEL_OK")
</pallas_src>

<mosaic_0001>
module attributes {stable_mosaic.version = 11 : i64} {
  func.func @_masked_mse_kernel(%arg0: i32, %arg1: i32, %arg2: memref<16x128xf32, #tpu.memory_space<vmem>>, %arg3: memref<16x128xf32, #tpu.memory_space<vmem>>, %arg4: memref<16x128xf32, #tpu.memory_space<vmem>>, %arg5: memref<1x8x128xf32, #tpu.memory_space<vmem>>, %arg6: memref<1x8x128xf32, #tpu.memory_space<vmem>>) attributes {dimension_semantics = [#tpu.dimension_semantics<parallel>, #tpu.dimension_semantics<arbitrary>], iteration_bounds = array<i64: 2, 1>, scalar_prefetch = 0 : i64, scratch_operands = 0 : i64, tpu.core_type = #tpu.core_type<tc>, window_params = [{transform_indices = @transform_0, window_bounds = array<i64: 16, 128>}, {transform_indices = @transform_1, window_bounds = array<i64: 16, 128>}, {transform_indices = @transform_2, window_bounds = array<i64: 16, 128>}, {transform_indices = @transform_3, window_bounds = array<i64: 1, 8, 128>}, {transform_indices = @transform_4, window_bounds = array<i64: 1, 8, 128>}]} {
    %c0_i32 = arith.constant 0 : i32
    %0 = arith.cmpi eq, %arg1, %c0_i32 : i32
    %1 = arith.extui %0 : i1 to i32
    %c0_i32_0 = arith.constant 0 : i32
    %2 = arith.cmpi ne, %1, %c0_i32_0 : i32
    scf.if %2 {
      %cst_22 = arith.constant 0.000000e+00 : f32
      %34 = vector.broadcast %cst_22 : f32 to vector<1x8x128xf32>
      %c0_23 = arith.constant 0 : index
      %c0_24 = arith.constant 0 : index
      %c0_25 = arith.constant 0 : index
      %35 = vector.load %arg5[%c0_23, %c0_24, %c0_25] : memref<1x8x128xf32, #tpu.memory_space<vmem>>, vector<1x8x128xf32>
      tpu.vector_store %arg5[%c0_23, %c0_24, %c0_25], %34 {strides = array<i32>} : memref<1x8x128xf32, #tpu.memory_space<vmem>>, vector<1x8x128xf32>,
      %cst_26 = arith.constant 0.000000e+00 : f32
      %36 = vector.broadcast %cst_26 : f32 to vector<1x8x128xf32>
      %c0_27 = arith.constant 0 : index
      %c0_28 = arith.constant 0 : index
      %c0_29 = arith.constant 0 : index
      %37 = vector.load %arg6[%c0_27, %c0_28, %c0_29] : memref<1x8x128xf32, #tpu.memory_space<vmem>>, vector<1x8x128xf32>
      tpu.vector_store %arg6[%c0_27, %c0_28, %c0_29], %36 {strides = array<i32>} : memref<1x8x128xf32, #tpu.memory_space<vmem>>, vector<1x8x128xf32>,
    } else {
    }
    %c0 = arith.constant 0 : index
    %c0_1 = arith.constant 0 : index
    %3 = vector.load %arg2[%c0, %c0_1] : memref<16x128xf32, #tpu.memory_space<vmem>>, vector<16x128xf32>
    %c0_2 = arith.constant 0 : index
    %c0_3 = arith.constant 0 : index
    %4 = vector.load %arg3[%c0_2, %c0_3] : memref<16x128xf32, #tpu.memory_space<vmem>>, vector<16x128xf32>
    %c0_4 = arith.constant 0 : index
    %c0_5 = arith.constant 0 : index
    %5 = vector.load %arg4[%c0_4, %c0_5] : memref<16x128xf32, #tpu.memory_space<vmem>>, vector<16x128xf32>
    %c1_i32 = arith.constant 1 : i32
    %6 = arith.muli %arg0, %c1_i32 : i32
    %7 = arith.addi %6, %arg1 : i32
    %c16_i32 = arith.constant 16 : i32
    %8 = arith.muli %7, %c16_i32 : i32
    %9 = tpu.iota {dimensions = array<i32: 0>} : vector<16x128xi32>
    %10 = vector.broadcast %8 : i32 to vector<16x128xi32>
    %11 = arith.addi %10, %9 : vector<16x128xi32>
    %c16_i32_6 = arith.constant 16 : i32
    %12 = vector.broadcast %c16_i32_6 : i32 to vector<16x128xi32>
    %13 = arith.cmpi slt, %11, %12 : vector<16x128xi32>
    %cst = arith.constant 0.000000e+00 : f32
    %14 = vector.broadcast %cst : f32 to vector<16x128xf32>
    %15 = arith.select %13, %5, %14 : vector<16x128xi1>, vector<16x128xf32>
    %16 = arith.subf %3, %4 : vector<16x128xf32>
    %17 = arith.subf %3, %4 : vector<16x128xf32>
    %18 = arith.mulf %16, %17 : vector<16x128xf32>
    %19 = arith.mulf %18, %15 : vector<16x128xf32>
    %cst_7 = arith.constant 0.000000e+00 : f32
    %20 = vector.broadcast %cst_7 : f32 to vector<16x128xf32>
    %21 = arith.select %13, %19, %20 : vector<16x128xi1>, vector<16x128xf32>
    %c0_8 = arith.constant 0 : index
    %c0_9 = arith.constant 0 : index
    %c0_10 = arith.constant 0 : index
    %22 = vector.load %arg5[%c0_8, %c0_9, %c0_10] : memref<1x8x128xf32, #tpu.memory_space<vmem>>, vector<1x8x128xf32>
    %23 = vector.shape_cast %21 : vector<16x128xf32> to vector<2x8x128xf32>
    %cst_11 = arith.constant dense<0.000000e+00> : vector<8x128xf32>
    %24 = vector.multi_reduction <add>, %23, %cst_11 [0] : vector<2x8x128xf32> to vector<8x128xf32>
    %25 = vector.shape_cast %24 : vector<8x128xf32> to vector<1x8x128xf32>
    %26 = arith.addf %22, %25 : vector<1x8x128xf32>
    %c0_12 = arith.constant 0 : index
    %c0_13 = arith.constant 0 : index
    %c0_14 = arith.constant 0 : index
    %27 = vector.load %arg5[%c0_12, %c0_13, %c0_14] : memref<1x8x128xf32, #tpu.memory_space<vmem>>, vector<1x8x128xf32>
    tpu.vector_store %arg5[%c0_12, %c0_13, %c0_14], %26 {strides = array<i32>} : memref<1x8x128xf32, #tpu.memory_space<vmem>>, vector<1x8x128xf32>,
    %c0_15 = arith.constant 0 : index
    %c0_16 = arith.constant 0 : index
    %c0_17 = arith.constant 0 : index
    %28 = vector.load %arg6[%c0_15, %c0_16, %c0_17] : memref<1x8x128xf32, #tpu.memory_space<vmem>>, vector<1x8x128xf32>
    %29 = vector.shape_cast %15 : vector<16x128xf32> to vector<2x8x128xf32>
    %cst_18 = arith.constant dense<0.000000e+00> : vector<8x128xf32>
    %30 = vector.multi_reduction <add>, %29, %cst_18 [0] : vector<2x8x128xf32> to vector<8x128xf32>
    %31 = vector.shape_cast %30 : vector<8x128xf32> to vector<1x8x128xf32>
    %32 = arith.addf %28, %31 : vector<1x8x128xf32>
    %c0_19 = arith.constant 0 : index
    %c0_20 = arith.constant 0 : index
    %c0_21 = arith.constant 0 : index
    %33 = vector.load %arg6[%c0_19, %c0_20, %c0_21] : memref<1x8x128xf32, #tpu.memory_space<vmem>>, vector<1x8x128xf32>
    tpu.vector_store %arg6[%c0_19, %c0_20, %c0_21], %32 {strides = array<i32>} : memref<1x8x128xf32, #tpu.memory_space<vmem>>, vector<1x8x128xf32>,
    return
  }
  func.func @transform_0(%arg0: i32, %arg1: i32) -> (i32, i32) {
    %c1_i32 = arith.constant 1 : i32
    %0 = arith.muli %arg0, %c1_i32 : i32
    %1 = arith.addi %0, %arg1 : i32
    %c0_i32 = arith.constant 0 : i32
    %2 = arith.minsi %1, %c0_i32 : i32
    %c0_i32_0 = arith.constant 0 : i32
    %c0_i32_1 = arith.constant 0 : i32
    return %2, %c0_i32_0 : i32, i32
  }
  func.func @transform_1(%arg0: i32, %arg1: i32) -> (i32, i32) {
    %c1_i32 = arith.constant 1 : i32
    %0 = arith.muli %arg0, %c1_i32 : i32
    %1 = arith.addi %0, %arg1 : i32
    %c0_i32 = arith.constant 0 : i32
    %2 = arith.minsi %1, %c0_i32 : i32
    %c0_i32_0 = arith.constant 0 : i32
    %c0_i32_1 = arith.constant 0 : i32
    return %2, %c0_i32_0 : i32, i32
  }
  func.func @transform_2(%arg0: i32, %arg1: i32) -> (i32, i32) {
    %c1_i32 = arith.constant 1 : i32
    %0 = arith.muli %arg0, %c1_i32 : i32
    %1 = arith.addi %0, %arg1 : i32
    %c0_i32 = arith.constant 0 : i32
    %2 = arith.minsi %1, %c0_i32 : i32
    %c0_i32_0 = arith.constant 0 : i32
    %c0_i32_1 = arith.constant 0 : i32
    return %2, %c0_i32_0 : i32, i32
  }
  func.func @transform_3(%arg0: i32, %arg1: i32) -> (i32, i32, i32) {
    %c0_i32 = arith.constant 0 : i32
    %c0_i32_0 = arith.constant 0 : i32
    %c0_i32_1 = arith.constant 0 : i32
    return %arg0, %c0_i32, %c0_i32_0 : i32, i32, i32
  }
  func.func @transform_4(%arg0: i32, %arg1: i32) -> (i32, i32, i32) {
    %c0_i32 = arith.constant 0 : i32
    %c0_i32_0 = arith.constant 0 : i32
    %c0_i32_1 = arith.constant 0 : i32
    return %arg0, %c0_i32, %c0_i32_0 : i32, i32, i32
  }
}

</mosaic_0001>

<llo_original>
// kernel: tpu_custom_call.1
$region0: #{tpu_custom_call.1}
  #allocation0 [shape = 'u32[]', space=smem, size = 0x4, offset = 0x4, fixed_abs, tag = 'smem constant byte address 0x4 - core index']
  #allocation1 [shape = 'u32[72,128]{1,0:T(1,128)}', space=vmem, size = 0x9000, scoped, tag = 'internal scratch']
  %s0 = inlined_call_operand.hbm [shape: f32[16,128], index: 0, kind: input, shape index: {}]
  %s1 = inlined_call_operand.hbm [shape: f32[16,128], index: 1, kind: input, shape index: {}]
  %s2 = inlined_call_operand.hbm [shape: f32[16,128], index: 2, kind: input, shape index: {}]
  %s3 = inlined_call_operand.hbm [shape: f32[2,8,128], index: 3, kind: output, shape index: {0}]
  %s4 = inlined_call_operand.hbm [shape: f32[2,8,128], index: 4, kind: output, shape index: {1}]
  %5 = xla_tuple %s3, %s4
  %s6 = sld [smem:[#allocation0]]
  $region69: #{tpu_custom_call.1} parent=0
    _
  %s8 = ssub.s32 1, %s6
  %s9 = scalar_select 0, %s8, %s6
  $region1: #{tpu_custom_call.1} parent=0
    #allocation2 [shape = 'u8[16384]{0}', space=vmem, size = 0x4000, scoped, tag = 'input window, operand 0']
    #allocation3 [shape = 's32[2]{0}', space=sflag, size = 0x8, scoped, tag = 'scoped memory for tpu_custom_call.1']
    #allocation4 [shape = 's32[2]{0}', space=sflag, size = 0x8, scoped, tag = 'scoped memory for tpu_custom_call.1']
    #allocation5 [shape = 'u8[16384]{0}', space=vmem, size = 0x4000, scoped, tag = 'input window, operand 1']
    #allocation6 [shape = 's32[2]{0}', space=sflag, size = 0x8, scoped, tag = 'scoped memory for tpu_custom_call.1']
    #allocation7 [shape = 'u8[16384]{0}', space=vmem, size = 0x4000, scoped, tag = 'input window, operand 2']
    #allocation8 [shape = 'u8[8192]{0}', space=vmem, size = 0x2000, scoped, tag = 'output window, operand 0']
    #allocation9 [shape = 'u8[8192]{0}', space=vmem, size = 0x2000, scoped, tag = 'output window, operand 1']
    #allocation10 [shape = 's32[2]{0}', space=sflag, size = 0x8, scoped, tag = 'scoped memory for tpu_custom_call.1']
    %10 = vsyncpa [#allocation3], 0
    %s11 = scalar_lea.sflag [#allocation3], 1
    %12 = vsyncpa %s11, 0
    %13 = vsyncpa [#allocation6], 0
    %s14 = scalar_lea.sflag [#allocation6], 1
    %15 = vsyncpa %s14, 0
    %16 = vsyncpa [#allocation4], 0
    %s17 = scalar_lea.sflag [#allocation4], 1
    %18 = vsyncpa %s17, 0
    %19 = vsyncpa [#allocation10], 0
    %s20 = scalar_lea.sflag [#allocation10], 1
    %21 = vsyncpa %s20, 0
    loop: start=0, step=1, limit=4
    $region2: #{tpu_custom_call.1} parent=1 // loop_pre_header
      _
    $region3: #{tpu_custom_call.1} parent=1 // loop_header
      %s23 = sphi 0, %s27
      %p24 = scmp.ge.s32.totalorder %s23, 4
      %s30 = sphi 0, %s42
      %s31 = sphi 0, %s38
      %s32 = sphi 0, %s30
      %s33 = sphi 0, %s31
      %s34 = sphi 0, %s32
      %s35 = sphi 0, %s33
      %s51 = sphi 0, %s53
      %s54 = sphi 0, %s51
      %s55 = sphi 0, %s54
      %s71 = sphi 0, %s55
      %s83 = sphi 0, %s85
      %s86 = sphi 0, %s83
      %s87 = sphi 0, %s86
      %s103 = sphi 0, %s87
      %s115 = sphi 0, %s117
      %s118 = sphi 0, %s115
      %s119 = sphi 0, %s118
      %s135 = sphi 0, %s119
      %s141 = sphi 0, %s143
      %s144 = sphi 0, %s141
      %s145 = sphi 0, %s144
      %s161 = sphi 0, %s145
      %s167 = sphi 0, %s169
      %s170 = sphi 0, %s167
      %s171 = sphi 0, %s170
      %s187 = sphi 0, %s171
    $region4: #{tpu_custom_call.1} parent=1 // loop_header_branch
      %26 = sbr.rel (%p24) target = $region8
    $region5: #{tpu_custom_call.1} parent=1 // loop_body
      %s28 = ssub.s32 %s23, 1
      %s29 = ssub.s32 %s23, 2
      %s36 = sadd.s32 1, %s31
      %p37 = scmp.ge.s32.totalorder %s36, 1
      %s38 = scalar_select %p37, 0, %s36
      %s39 = sadd.s32 1, %s30
      %s40 = scalar_select %p37, %s39, %s30
      %p41 = scmp.ge.s32.totalorder %s40, 2
      %s42 = scalar_select %p41, 0, %s40
      %s43 = sadd.s32 %s30, %s31
      %p44 = scmp.lt.s32.totalorder %s43, 0
      %s45 = scalar_select %p44, %s43, 0
      %s46 = sadd.s32 %s42, %s38
      %p47 = scmp.lt.s32.totalorder %s46, 0
      %s48 = scalar_select %p47, %s46, 0
      %s49 = ssub.s32 %s45, %s48
      %p50 = scmp.eq.s32.totalorder %s49, 0
      %s52 = sadd.s32 %s51, 1
      %s53 = scalar_select %p50, %s51, %s52
      %p56 = pneg %p50
      %p57 = scmp.eq.s32.totalorder %s23, 1
      %p58 = por %p56, %p57
      %p59 = scmp.ne.s32.totalorder %s51, %s54
      %p60 = scmp.eq.s32.totalorder %s23, 0
      %p61 = por %p59, %p60
      %p62 = scmp.ne.s32.totalorder %s51, %s54
      %p63 = scmp.eq.s32.totalorder %s28, 1
      %p64 = por %p62, %p63
      %p65 = scmp.ne.s32.totalorder %s54, %s55
      %p66 = scmp.eq.s32.totalorder %s28, 0
      %p67 = por %p65, %p66
      %p68 = scmp.ne.s32.totalorder %s54, %s55
      %p69 = scmp.eq.s32.totalorder %s29, 1
      %p70 = por %p68, %p69
      %p72 = scmp.ne.s32.totalorder %s55, %s71
      %p73 = scmp.eq.s32.totalorder %s29, 0
      %p74 = por %p72, %p73
      %s75 = sadd.s32 %s30, %s31
      %p76 = scmp.lt.s32.totalorder %s75, 0
      %s77 = scalar_select %p76, %s75, 0
      %s78 = sadd.s32 %s42, %s38
      %p79 = scmp.lt.s32.totalorder %s78, 0
      %s80 = scalar_select %p79, %s78, 0
      %s81 = ssub.s32 %s77, %s80
      %p82 = scmp.eq.s32.totalorder %s81, 0
      %s84 = sadd.s32 %s83, 1
      %s85 = scalar_select %p82, %s83, %s84
      %p88 = pneg %p82
      %p89 = scmp.eq.s32.totalorder %s23, 1
      %p90 = por %p88, %p89
      %p91 = scmp.ne.s32.totalorder %s83, %s86
      %p92 = scmp.eq.s32.totalorder %s23, 0
      %p93 = por %p91, %p92
      %p94 = scmp.ne.s32.totalorder %s83, %s86
      %p95 = scmp.eq.s32.totalorder %s28, 1
      %p96 = por %p94, %p95
      %p97 = scmp.ne.s32.totalorder %s86, %s87
      %p98 = scmp.eq.s32.totalorder %s28, 0
      %p99 = por %p97, %p98
      %p100 = scmp.ne.s32.totalorder %s86, %s87
      %p101 = scmp.eq.s32.totalorder %s29, 1
      %p102 = por %p100, %p101
      %p104 = scmp.ne.s32.totalorder %s87, %s103
      %p105 = scmp.eq.s32.totalorder %s29, 0
      %p106 = por %p104, %p105
      %s107 = sadd.s32 %s30, %s31
      %p108 = scmp.lt.s32.totalorder %s107, 0
      %s109 = scalar_select %p108, %s107, 0
      %s110 = sadd.s32 %s42, %s38
      %p111 = scmp.lt.s32.totalorder %s110, 0
      %s112 = scalar_select %p111, %s110, 0
      %s113 = ssub.s32 %s109, %s112
      %p114 = scmp.eq.s32.totalorder %s113, 0
      %s116 = sadd.s32 %s115, 1
      %s117 = scalar_select %p114, %s115, %s116
      %p120 = pneg %p114
      %p121 = scmp.eq.s32.totalorder %s23, 1
      %p122 = por %p120, %p121
      %p123 = scmp.ne.s32.totalorder %s115, %s118
      %p124 = scmp.eq.s32.totalorder %s23, 0
      %p125 = por %p123, %p124
      %p126 = scmp.ne.s32.totalorder %s115, %s118
      %p127 = scmp.eq.s32.totalorder %s28, 1
      %p128 = por %p126, %p127
      %p129 = scmp.ne.s32.totalorder %s118, %s119
      %p130 = scmp.eq.s32.totalorder %s28, 0
      %p131 = por %p129, %p130
      %p132 = scmp.ne.s32.totalorder %s118, %s119
      %p133 = scmp.eq.s32.totalorder %s29, 1
      %p134 = por %p132, %p133
      %p136 = scmp.ne.s32.totalorder %s119, %s135
      %p137 = scmp.eq.s32.totalorder %s29, 0
      %p138 = por %p136, %p137
      %s139 = ssub.s32 %s30, %s42
      %p140 = scmp.eq.s32.totalorder %s139, 0
      %s142 = sadd.s32 %s141, 1
      %s143 = scalar_select %p140, %s141, %s142
      %p146 = pneg %p140
      %p147 = scmp.eq.s32.totalorder %s23, 1
      %p148 = por %p146, %p147
      %p149 = scmp.ne.s32.totalorder %s141, %s144
      %p150 = scmp.eq.s32.totalorder %s23, 0
      %p151 = por %p149, %p150
      %p152 = scmp.ne.s32.totalorder %s141, %s144
      %p153 = scmp.eq.s32.totalorder %s28, 1
      %p154 = por %p152, %p153
      %p155 = scmp.ne.s32.totalorder %s144, %s145
      %p156 = scmp.eq.s32.totalorder %s28, 0
      %p157 = por %p155, %p156
      %p158 = scmp.ne.s32.totalorder %s144, %s145
      %p159 = scmp.eq.s32.totalorder %s29, 1
      %p160 = por %p158, %p159
      %p162 = scmp.ne.s32.totalorder %s145, %s161
      %p163 = scmp.eq.s32.totalorder %s29, 0
      %p164 = por %p162, %p163
      %s165 = ssub.s32 %s30, %s42
      %p166 = scmp.eq.s32.totalorder %s165, 0
      %s168 = sadd.s32 %s167, 1
      %s169 = scalar_select %p166, %s167, %s168
      %p172 = pneg %p166
      %p173 = scmp.eq.s32.totalorder %s23, 1
      %p174 = por %p172, %p173
      %p175 = scmp.ne.s32.totalorder %s167, %s170
      %p176 = scmp.eq.s32.totalorder %s23, 0
      %p177 = por %p175, %p176
      %p178 = scmp.ne.s32.totalorder %s167, %s170
      %p179 = scmp.eq.s32.totalorder %s28, 1
      %p180 = por %p178, %p179
      %p181 = scmp.ne.s32.totalorder %s170, %s171
      %p182 = scmp.eq.s32.totalorder %s28, 0
      %p183 = por %p181, %p182
      %p184 = scmp.ne.s32.totalorder %s170, %s171
      %p185 = scmp.eq.s32.totalorder %s29, 1
      %p186 = por %p184, %p185
      %p188 = scmp.ne.s32.totalorder %s171, %s187
      %p189 = scmp.eq.s32.totalorder %s29, 0
      %p190 = por %p188, %p189
      %p191 = scmp.le.s32.totalorder 1, %s23
      %p192 = scmp.lt.s32.totalorder %s23, 3
      %p193 = pnand %p191, %p192
      %p194 = pneg %p193
      // Predicated region
      $region9: #{tpu_custom_call.1} parent=5 // pred_check
        _
      $region10: #{tpu_custom_call.1} parent=5 // pred_check_branch
        %196 = sbr.rel (%p193) target = $region12
      $region11: #{tpu_custom_call.1} parent=5 // pred_region
        %s197 = ssub.s32 %s23, 1
      $region12: #{tpu_custom_call.1} parent=5 // pred_fallthru
        _
      %p198 = scmp.lt.s32.totalorder %s23, 2
      // Predicated region
      $region13: #{tpu_custom_call.1} parent=5 // pred_check
        %p199 = pneg %p198
      $region14: #{tpu_custom_call.1} parent=5 // pred_check_branch
        %201 = sbr.rel (%p199) target = $region16
      $region15: #{tpu_custom_call.1} parent=5 // pred_region
        // Predicated region
        $region17: #{tpu_custom_call.1} parent=15 // pred_check
          %p202 = pneg %p61
        $region18: #{tpu_custom_call.1} parent=15 // pred_check_branch
          %204 = sbr.rel (%p202) target = $region20
        $region19: #{tpu_custom_call.1} parent=15 // pred_region
          %s205 = sand.u32 %s51, 1
          %s206 = scalar_lea.sflag [#allocation3], %s205
          %s207 = sand.u32 %s51, 1
          %s208 = smul.addr %s207, 16
          %s209 = scalar_lea.vmem [#allocation2], %s208
          %s210 = sadd.s32 %s30, %s31
          %p211 = scmp.lt.s32.totalorder %s210, 0
          %s212 = scalar_select %p211, %s210, 0
          %s213 = smul.u32 2, %s212
          %215 = vsyncadd %s206, 0
          %s216 = smul.addr %s213, 8
          %s217 = scalar_lea.hbm %s0, %s216
          %s218 = sshll.u32 %s217, 4
          %s219 = int_to_ptr.hbm [resolvable:$true] %s218
          %s220 = sshll.u32 %s209, 4
          %s221 = int_to_ptr.vmem [resolvable:$true] %s220
          %226 = dma.hbm_to_vmem [thread:$0]  %s219, 256, %s221, %s206, 128, 128, 8
        $region20: #{tpu_custom_call.1} parent=15 // pred_fallthru
          _
        // Predicated region
        $region21: #{tpu_custom_call.1} parent=15 // pred_check
          %p227 = pneg %p93
        $region22: #{tpu_custom_call.1} parent=15 // pred_check_branch
          %229 = sbr.rel (%p227) target = $region24
        $region23: #{tpu_custom_call.1} parent=15 // pred_region
          %s230 = sand.u32 %s23, 1
          %s231 = scalar_lea.sflag [#allocation6], %s230
          %s232 = sand.u32 %s83, 1
          %s233 = smul.addr %s232, 16
          %s234 = scalar_lea.vmem [#allocation5], %s233
          %s235 = sadd.s32 %s30, %s31
          %p236 = scmp.lt.s32.totalorder %s235, 0
          %s237 = scalar_select %p236, %s235, 0
          %s238 = smul.u32 2, %s237
          %240 = vsyncadd %s231, 0
          %s241 = smul.addr %s238, 8
          %s242 = scalar_lea.hbm %s1, %s241
          %s243 = sshll.u32 %s242, 4
          %s244 = int_to_ptr.hbm [resolvable:$true] %s243
          %s245 = sshll.u32 %s234, 4
          %s246 = int_to_ptr.vmem [resolvable:$true] %s245
          %251 = dma.hbm_to_vmem [thread:$0]  %s244, 256, %s246, %s231, 128, 128, 8
        $region24: #{tpu_custom_call.1} parent=15 // pred_fallthru
          _
        // Predicated region
        $region25: #{tpu_custom_call.1} parent=15 // pred_check
          %p252 = pneg %p125
        $region26: #{tpu_custom_call.1} parent=15 // pred_check_branch
          %254 = sbr.rel (%p252) target = $region28
        $region27: #{tpu_custom_call.1} parent=15 // pred_region
          %s255 = sand.u32 %s23, 1
          %s256 = scalar_lea.sflag [#allocation6], %s255
          %s257 = sand.u32 %s115, 1
          %s258 = smul.addr %s257, 16
          %s259 = scalar_lea.vmem [#allocation7], %s258
          %s260 = sadd.s32 %s30, %s31
          %p261 = scmp.lt.s32.totalorder %s260, 0
          %s262 = scalar_select %p261, %s260, 0
          %s263 = smul.u32 2, %s262
          %265 = vsyncadd %s256, 0
          %s266 = smul.addr %s263, 8
          %s267 = scalar_lea.hbm %s2, %s266
          %s268 = sshll.u32 %s267, 4
          %s269 = int_to_ptr.hbm [resolvable:$true] %s268
          %s270 = sshll.u32 %s259, 4
          %s271 = int_to_ptr.vmem [resolvable:$true] %s270
          %276 = dma.hbm_to_vmem [thread:$0]  %s269, 256, %s271, %s256, 128, 128, 8
        $region28: #{tpu_custom_call.1} parent=15 // pred_fallthru
          _
      $region16: #{tpu_custom_call.1} parent=5 // pred_fallthru
        _
      %p277 = scmp.le.s32.totalorder 1, %s23
      %p278 = scmp.lt.s32.totalorder %s23, 3
      %p279 = pnand %p277, %p278
      %p280 = pneg %p279
      // Predicated region
      $region29: #{tpu_custom_call.1} parent=5 // pred_check
        _
      $region30: #{tpu_custom_call.1} parent=5 // pred_check_branch
        %282 = sbr.rel (%p279) target = $region32
      $region31: #{tpu_custom_call.1} parent=5 // pred_region
        %s283 = ssub.s32 %s23, 1
        %s284 = sand.u32 %s54, 1
        %s285 = scalar_lea.sflag [#allocation3], %s284
        %s286 = sand.u32 %s54, 1
        %s287 = smul.addr %s286, 16
        %s288 = scalar_lea.vmem [#allocation2], %s287
        // Predicated region
        $region33: #{tpu_custom_call.1} parent=31 // pred_check
          %p289 = pneg %p67
        $region34: #{tpu_custom_call.1} parent=31 // pred_check_branch
          %291 = sbr.rel (%p289) target = $region36
        $region35: #{tpu_custom_call.1} parent=31 // pred_region
          %293 = dma.done %s285, 256
        $region36: #{tpu_custom_call.1} parent=31 // pred_fallthru
          _
        %s294 = sand.u32 %s28, 1
        %s295 = scalar_lea.sflag [#allocation6], %s294
        %s296 = sand.u32 %s86, 1
        %s297 = smul.addr %s296, 16
        %s298 = scalar_lea.vmem [#allocation5], %s297
        // Predicated region
        $region37: #{tpu_custom_call.1} parent=31 // pred_check
          %p299 = pneg %p99
        $region38: #{tpu_custom_call.1} parent=31 // pred_check_branch
          %301 = sbr.rel (%p299) target = $region40
        $region39: #{tpu_custom_call.1} parent=31 // pred_region
          %303 = dma.done %s295, 256
        $region40: #{tpu_custom_call.1} parent=31 // pred_fallthru
          _
        %s304 = sand.u32 %s28, 1
        %s305 = scalar_lea.sflag [#allocation6], %s304
        %s306 = sand.u32 %s118, 1
        %s307 = smul.addr %s306, 16
        %s308 = scalar_lea.vmem [#allocation7], %s307
        // Predicated region
        $region41: #{tpu_custom_call.1} parent=31 // pred_check
          %p309 = pneg %p131
        $region42: #{tpu_custom_call.1} parent=31 // pred_check_branch
          %311 = sbr.rel (%p309) target = $region44
        $region43: #{tpu_custom_call.1} parent=31 // pred_region
          %313 = dma.done %s305, 256
        $region44: #{tpu_custom_call.1} parent=31 // pred_fallthru
          _
        %s314 = sand.u32 %s54, 1
        %s315 = scalar_lea.sflag [#allocation3], %s314
        %s316 = sand.u32 %s54, 1
        %s317 = smul.addr %s316, 16
        %s318 = scalar_lea.vmem [#allocation2], %s317
        %p319 = pneg %p67
        %p320 = pneg %p64
        %s321 = sand.u32 %s28, 1
        %s322 = scalar_lea.sflag [#allocation6], %s321
        %s323 = sand.u32 %s86, 1
        %s324 = smul.addr %s323, 16
        %s325 = scalar_lea.vmem [#allocation5], %s324
        %p326 = pneg %p99
        %p327 = pneg %p96
        %s328 = sand.u32 %s28, 1
        %s329 = scalar_lea.sflag [#allocation6], %s328
        %s330 = sand.u32 %s118, 1
        %s331 = smul.addr %s330, 16
        %s332 = scalar_lea.vmem [#allocation7], %s331
        %p333 = pneg %p131
        %p334 = pneg %p128
        %p335 = pneg %p157
        %p336 = pneg %p154
        %s337 = sand.u32 %s144, 1
        %s338 = scalar_lea.sflag [#allocation4], %s337
        %s339 = sand.u32 %s144, 1
        %s340 = smul.addr %s339, 8
        %s341 = scalar_lea.vmem [#allocation8], %s340
        %p342 = pneg %p183
        %p343 = pneg %p180
        %s344 = sand.u32 %s170, 1
        %s345 = scalar_lea.sflag [#allocation10], %s344
        %s346 = sand.u32 %s170, 1
        %s347 = smul.addr %s346, 8
        %s348 = scalar_lea.vmem [#allocation9], %s347
        %s349 = sadd.s32 %s32, %s33
        %p350 = scmp.lt.s32.totalorder %s349, 0
        %s351 = scalar_select %p350, %s349, 0
        %s352 = smul.u32 2, %s351
        %s353 = sadd.s32 %s32, %s33
        %p354 = scmp.lt.s32.totalorder %s353, 0
        %s355 = scalar_select %p354, %s353, 0
        %s356 = smul.u32 2, %s355
        %s357 = sadd.s32 %s32, %s33
        %p358 = scmp.lt.s32.totalorder %s357, 0
        %s359 = scalar_select %p358, %s357, 0
        %s360 = smul.u32 2, %s359
        %p361 = scmp.eq.s32.totalorder %s33, 0
        // Predicated region
        $region45: #{tpu_custom_call.1} parent=31 // pred_check
          %p362 = pneg %p361
        $region46: #{tpu_custom_call.1} parent=31 // pred_check_branch
          %364 = sbr.rel (%p362) target = $region48
        $region47: #{tpu_custom_call.1} parent=31 // pred_region
          %365 = vst [vmem:[%s341] sm:$0xff] 0.0
          %366 = vst [vmem:[%s348] sm:$0xff] 0.0
        $region48: #{tpu_custom_call.1} parent=31 // pred_fallthru
          _
        %v367 = vld [vmem:[%s288] sm:$0xff]
        %v368 = vld [vmem:[%s288 + $0x8] sm:$0xff]
        %v369 = vld [vmem:[%s298] sm:$0xff]
        %v370 = vld [vmem:[%s298 + $0x8] sm:$0xff]
        %v371 = vld [vmem:[%s308] sm:$0xff]
        %v372 = vld [vmem:[%s308 + $0x8] sm:$0xff]
        %s373 = sadd.s32 %s32, %s33
        %s374 = smul.u32 %s373, 16
        %v375 = vlaneseq
        %v376 = vshrl.u32 %v375, 7
        %v377 = vadd.s32 %v376, 8
        %v378 = vstv %s374
        %v379 = vadd.s32 %v378, %v376
        %v380 = vadd.s32 %v378, %v377
        %vm381 = vcmp.lt.s32.totalorder %v379, 16
        %vm382 = vcmp.lt.s32.totalorder %v380, 16
        %v383 = vsel %vm381, %v371, 0.0
        %v384 = vsel %vm382, %v372, 0.0
        %v385 = vsub.f32 %v367, %v369
        %v386 = vsub.f32 %v368, %v370
        %v387 = vmul.f32 %v385, %v385
        %v388 = vmul.f32 %v386, %v386
        %v389 = vmul.f32 %v387, %v383
        %v390 = vmul.f32 %v388, %v384
        %v391 = vsel %vm381, %v389, 0.0
        %v392 = vsel %vm382, %v390, 0.0
        %v393 = vld [vmem:[%s341] sm:$0xff]
        %v394 = vadd.f32 %v391, %v392
        %v395 = vadd.f32 %v393, %v394
        %396 = vst [vmem:[%s341] sm:$0xff] %v395
        %v397 = vld [vmem:[%s348] sm:$0xff]
        %v398 = vadd.f32 %v383, %v384
        %v399 = vadd.f32 %v397, %v398
        %400 = vst [vmem:[%s348] sm:$0xff] %v399
        %s401 = sand.u32 %s144, 1
        %s402 = scalar_lea.sflag [#allocation4], %s401
        %s403 = sand.u32 %s144, 1
        %s404 = smul.addr %s403, 8
        %s405 = scalar_lea.vmem [#allocation8], %s404
        %s406 = sand.u32 %s170, 1
        %s407 = scalar_lea.sflag [#allocation10], %s406
        %s408 = sand.u32 %s170, 1
        %s409 = smul.addr %s408, 8
        %s410 = scalar_lea.vmem [#allocation9], %s409
        // Predicated region
        $region49: #{tpu_custom_call.1} parent=31 // pred_check
          %p411 = pneg %p154
        $region50: #{tpu_custom_call.1} parent=31 // pred_check_branch
          %413 = sbr.rel (%p411) target = $region52
        $region51: #{tpu_custom_call.1} parent=31 // pred_region
          %415 = vsyncadd %s402, 0
          %s416 = smul.addr %s32, 8
          %s417 = scalar_lea.hbm %s3, %s416
          %s419 = sshll.u32 %s405, 4
          %s420 = int_to_ptr.vmem [resolvable:$true] %s419
          %s421 = sshll.u32 %s417, 4
          %s422 = int_to_ptr.hbm [resolvable:$true] %s421
          %424 = dma.vmem_to_hbm [thread:$0]  %s420, 128, %s422, %s402
        $region52: #{tpu_custom_call.1} parent=31 // pred_fallthru
          _
        // Predicated region
        $region53: #{tpu_custom_call.1} parent=31 // pred_check
          %p425 = pneg %p180
        $region54: #{tpu_custom_call.1} parent=31 // pred_check_branch
          %427 = sbr.rel (%p425) target = $region56
        $region55: #{tpu_custom_call.1} parent=31 // pred_region
          %429 = vsyncadd %s407, 0
          %s430 = smul.addr %s32, 8
          %s431 = scalar_lea.hbm %s4, %s430
          %s433 = sshll.u32 %s410, 4
          %s434 = int_to_ptr.vmem [resolvable:$true] %s433
          %s435 = sshll.u32 %s431, 4
          %s436 = int_to_ptr.hbm [resolvable:$true] %s435
          %438 = dma.vmem_to_hbm [thread:$0]  %s434, 128, %s436, %s407
        $region56: #{tpu_custom_call.1} parent=31 // pred_fallthru
          _
      $region32: #{tpu_custom_call.1} parent=5 // pred_fallthru
        _
      %p439 = scmp.le.s32.totalorder 2, %s23
      // Predicated region
      $region57: #{tpu_custom_call.1} parent=5 // pred_check
        %p440 = pneg %p439
      $region58: #{tpu_custom_call.1} parent=5 // pred_check_branch
        %442 = sbr.rel (%p440) target = $region60
      $region59: #{tpu_custom_call.1} parent=5 // pred_region
        %s443 = ssub.s32 %s23, 2
        // Predicated region
        $region61: #{tpu_custom_call.1} parent=59 // pred_check
          %p444 = pneg %p160
        $region62: #{tpu_custom_call.1} parent=59 // pred_check_branch
          %446 = sbr.rel (%p444) target = $region64
        $region63: #{tpu_custom_call.1} parent=59 // pred_region
          %s447 = sand.u32 %s145, 1
          %s448 = scalar_lea.sflag [#allocation4], %s447
          %s449 = sand.u32 %s145, 1
          %s450 = smul.addr %s449, 8
          %s451 = scalar_lea.vmem [#allocation8], %s450
          %453 = dma.done %s448, 128
        $region64: #{tpu_custom_call.1} parent=59 // pred_fallthru
          _
        // Predicated region
        $region65: #{tpu_custom_call.1} parent=59 // pred_check
          %p454 = pneg %p186
        $region66: #{tpu_custom_call.1} parent=59 // pred_check_branch
          %456 = sbr.rel (%p454) target = $region68
        $region67: #{tpu_custom_call.1} parent=59 // pred_region
          %s457 = sand.u32 %s171, 1
          %s458 = scalar_lea.sflag [#allocation10], %s457
          %s459 = sand.u32 %s171, 1
          %s460 = smul.addr %s459, 8
          %s461 = scalar_lea.vmem [#allocation9], %s460
          %463 = dma.done %s458, 128
        $region68: #{tpu_custom_call.1} parent=59 // pred_fallthru
          _
      $region60: #{tpu_custom_call.1} parent=5 // pred_fallthru
        _
    $region6: #{tpu_custom_call.1} parent=1 // loop_footer
      %s27 = sadd.s32 1, %s23
    $region7: #{tpu_custom_call.1} parent=1 // loop_footer_branch
      %22 = sbr.rel target = $region3
    $region8: #{tpu_custom_call.1} parent=1 // loop_exit
      _
    %464 = vsyncpa [#allocation3], 1
    %s465 = scalar_lea.sflag [#allocation3], 1
    %466 = vsyncpa %s465, 1
    %467 = vsyncpa [#allocation6], 1
    %s468 = scalar_lea.sflag [#allocation6], 1
    %469 = vsyncpa %s468, 1
    %470 = vsyncpa [#allocation4], 1
    %s471 = scalar_lea.sflag [#allocation4], 1
    %472 = vsyncpa %s471, 1
    %473 = vsyncpa [#allocation10], 1
    %s474 = scalar_lea.sflag [#allocation10], 1
    %475 = vsyncpa %s474, 1

</llo_original>
